<compile_context>
chip_gen: v7x
topology: tpu7x:2x2x1
jax: 0.10.0
libtpu: 0.0.40
codegen_flags: <defaults>
</compile_context>

<pallas_src>
import jax
import jax.numpy as jnp
from jax.experimental import pallas as pl
from jax.experimental.pallas import tpu as pltpu


# ----------------------------------------------------------------------------
# Pallas kernels
# ----------------------------------------------------------------------------
def conv_bn_relu_kernel(p_ref, w_ref, b_ref, o_ref):
    """Fused conv-as-matmul + folded-BN bias + ReLU.

    p_ref: (TM, K)    bf16 im2col patch tile
    w_ref: (K, Cout)  bf16 conv weight with BN scale pre-folded (resident across grid steps)
    b_ref: (1, Cout)  f32 folded BN bias
    o_ref: (TM, Cout) f32 output tile
    """
    acc = jnp.dot(p_ref[...], w_ref[...], preferred_element_type=jnp.float32)
    o_ref[...] = jnp.maximum(acc + b_ref[...], 0.0)


def maxpool_3x3_s2_kernel(x_ref, o_ref):
    """3x3 stride-2 pad-1 maxpool on parity-split, (-inf)-padded channels-last planes.

    x_ref: (4, OH2+1, OW2+1, C) -- planes [EE, EO, OE, OO] of one image, each padded with a
           leading -inf row and column, i.e. plane[i+1, j+1] = y[2*i + rp, 2*j + cp].
    o_ref: (1, OH2, OW2, C)
    Only shift-by-one (contiguous) slices are used -- no strided in-kernel access.
    """
    ee = x_ref[0]   # even rows, even cols
    eo = x_ref[1]   # even rows, odd  cols
    oe = x_ref[2]   # odd  rows, even cols
    oo = x_ref[3]   # odd  rows, odd  cols

    # combine along the window's column axis: cols {E[ow], O[ow-1], O[ow]}
    eo_c = jnp.maximum(eo[:, :-1, :], eo[:, 1:, :])
    oo_c = jnp.maximum(oo[:, :-1, :], oo[:, 1:, :])
    row_e = jnp.maximum(ee[:, 1:, :], eo_c)   # all even-row window terms
    row_o = jnp.maximum(oe[:, 1:, :], oo_c)   # all odd-row window terms
    # combine along the window's row axis: rows {E[oh], O[oh-1], O[oh]}
    o_ref[0] = jnp.maximum(row_e[1:], jnp.maximum(row_o[:-1], row_o[1:]))


# ----------------------------------------------------------------------------
# Wrappers (im2col / layout plumbing stays in plain JAX; hot paths are Pallas)
# ----------------------------------------------------------------------------
def conv_bn_relu_parity(x_nchw, w_oikk, bn_gamma, bn_beta, bn_mean, bn_var,
                        eps=1e-5, tm=512, matmul_dtype=jnp.bfloat16):
    """conv1 + folded BN + ReLU. Returns the activation in a parity-split channels-last
    layout (N, 2, 2, OH2, OW2, Cout) so the maxpool consumes it with zero extra transposes."""
    N, C, H, W = x_nchw.shape
    Cout, Cin, KH, KW = w_oikk.shape
    assert Cin == C
    stride, pad = 2, 3
    OH1 = (H + 2 * pad - KH) // stride + 1
    OW1 = (W + 2 * pad - KW) // stride + 1
    assert OH1 % 2 == 0 and OW1 % 2 == 0, "stem expects even conv1 output (even H/W input)"
    OH2, OW2 = OH1 // 2, OW1 // 2

    # --- im2col in parity order (glue; XLA fuses these copies) ---------------
    xb = x_nchw.astype(matmul_dtype)
    xp = jnp.pad(xb, ((0, 0), (0, 0), (pad, pad), (pad, pad)))
    views = []
    for ki in range(KH):
        for kj in range(KW):
            views.append(xp[:, :, ki:ki + stride * (OH1 - 1) + 1:stride,
                                  kj:kj + stride * (OW1 - 1) + 1:stride])  # (N, C, OH1, OW1)
    patches = jnp.transpose(jnp.stack(views, axis=0), (1, 3, 4, 2, 0))     # (N, OH1, OW1, C, 49)
    # order output rows as (n, row_parity, col_parity, oh2, ow2)
    patches = patches.reshape(N, OH2, 2, OW2, 2, C, KH * KW)
    patches = jnp.transpose(patches, (0, 2, 4, 1, 3, 5, 6))
    M = N * OH1 * OW1
    K = C * KH * KW
    patches = patches.reshape(M, K)

    # --- fold BN (eval mode) into weight / bias -------------------------------
    scale = bn_gamma / jnp.sqrt(bn_var + eps)                       # (Cout,)
    bias = (bn_beta - bn_mean * scale).reshape(1, Cout).astype(jnp.float32)
    w_flat = w_oikk.reshape(Cout, K).T                              # (K, Cout), (c, kh, kw) order
    w_scaled = (w_flat * scale[None, :]).astype(matmul_dtype)

    # --- ragged-tail handling: pad M up to a multiple of the row tile ---------
    TM = tm if M >= tm else max(16, ((M + 15) // 16) * 16)
    Mp = pl.cdiv(M, TM) * TM
    if Mp != M:
        patches = jnp.pad(patches, ((0, Mp - M), (0, 0)))

    out_flat = pl.pallas_call(
        conv_bn_relu_kernel,
        out_shape=jax.ShapeDtypeStruct((Mp, Cout), jnp.float32),
        grid_spec=pltpu.PrefetchScalarGridSpec(
            num_scalar_prefetch=0,
            grid=(Mp // TM,),
            in_specs=[
                pl.BlockSpec((TM, K), lambda i: (i, 0)),
                pl.BlockSpec((K, Cout), lambda i: (0, 0)),   # weight stays resident
                pl.BlockSpec((1, Cout), lambda i: (0, 0)),
            ],
            out_specs=pl.BlockSpec((TM, Cout), lambda i: (i, 0)),
        ),
        compiler_params=pltpu.CompilerParams(
            dimension_semantics=("parallel",),
            vmem_limit_bytes=32 * 1024 * 1024),
    )(patches, w_scaled, bias)

    out_flat = out_flat[:M]
    return out_flat.reshape(N, 2, 2, OH2, OW2, Cout)


def maxpool_3x3_s2_p1_parity(y_parity):
    """maxpool(3,2,1) over the parity-split channels-last conv activation.
    y_parity: (N, 2, 2, OH2, OW2, C) -> (N, OH2, OW2, C)."""
    N, _, _, OH2, OW2, C = y_parity.shape
    # one -inf row/col of padding per plane (the only materializing copy in this stage)
    yp = jnp.pad(y_parity, ((0, 0), (0, 0), (0, 0), (1, 0), (1, 0), (0, 0)),
                 constant_values=-jnp.inf)
    yp = yp.reshape(N * 4, OH2 + 1, OW2 + 1, C)   # [EE, EO, OE, OO] per image, free reshape

    return pl.pallas_call(
        maxpool_3x3_s2_kernel,
        out_shape=jax.ShapeDtypeStruct((N, OH2, OW2, C), jnp.float32),
        grid_spec=pltpu.PrefetchScalarGridSpec(
            num_scalar_prefetch=0,
            grid=(N,),
            in_specs=[pl.BlockSpec((4, OH2 + 1, OW2 + 1, C), lambda n: (n, 0, 0, 0))],
            out_specs=pl.BlockSpec((1, OH2, OW2, C), lambda n: (n, 0, 0, 0)),
        ),
        compiler_params=pltpu.CompilerParams(
            dimension_semantics=("parallel",),
            vmem_limit_bytes=32 * 1024 * 1024),
    )(yp)


def new_model_forward(x_nchw, params):
    y = conv_bn_relu_parity(x_nchw, params["conv1_w"], params["bn1_gamma"],
                            params["bn1_beta"], params["bn1_mean"], params["bn1_var"])
    y = maxpool_3x3_s2_p1_parity(y)            # (N, OH2, OW2, C) channels-last
    return jnp.transpose(y, (0, 3, 1, 2))      # single NHWC -> NCHW at the very end


# ----------------------------------------------------------------------------
# Reference (plain XLA, f32) and test harness
# ----------------------------------------------------------------------------
def reference_forward(x, params, eps=1e-5):
    y = jax.lax.conv_general_dilated(
        x, params["conv1_w"], window_strides=(2, 2), padding=((3, 3), (3, 3)),
        dimension_numbers=("NCHW", "OIHW", "NCHW"))
    scale = params["bn1_gamma"] / jnp.sqrt(params["bn1_var"] + eps)
    shift = params["bn1_beta"] - params["bn1_mean"] * scale
    y = jnp.maximum(y * scale[None, :, None, None] + shift[None, :, None, None], 0.0)
    return jax.lax.reduce_window(
        y, -jnp.inf, jax.lax.max, (1, 1, 3, 3), (1, 1, 2, 2),
        padding=((0, 0), (0, 0), (1, 1), (1, 1)))


def init_params(key):
    k1, k2, k3, k4, k5 = jax.random.split(key, 5)
    Cout, Cin, KH, KW = 64, 3, 7, 7
    return {
        "conv1_w": jax.random.normal(k1, (Cout, Cin, KH, KW), jnp.float32) * 0.05,
        "bn1_gamma": 1.0 + 0.1 * jax.random.normal(k2, (Cout,), jnp.float32),
        "bn1_beta": 0.1 * jax.random.normal(k3, (Cout,), jnp.float32),
        "bn1_mean": 0.1 * jax.random.normal(k4, (Cout,), jnp.float32),
        "bn1_var": jnp.abs(jax.random.normal(k5, (Cout,), jnp.float32)) + 0.5,
    }


if __name__ == "__main__":
    key = jax.random.PRNGKey(0)
    pkey, xkey = jax.random.split(key)
    params = init_params(pkey)

    # small input consistent with the module: NCHW, 3 input channels
    x = jax.random.normal(xkey, (2, 3, 32, 32), jnp.float32)

    out = jax.jit(new_model_forward)(x, params)
    out = jax.block_until_ready(out)
    assert out.shape == (2, 64, 8, 8), out.shape

    ref = reference_forward(x, params)
    err = float(jnp.max(jnp.abs(out - ref)))
    # loose tolerance: the kernel uses bf16 matmul operands with f32 accumulation
    assert err < 1e-1, f"max abs err vs f32 reference: {err}"
    print("KERNEL_OK")
</pallas_src>

<mosaic_0001>
module attributes {stable_mosaic.version = 11 : i64} {
  func.func @conv_bn_relu_kernel(%arg0: i32, %arg1: memref<512x147xbf16, #tpu.memory_space<vmem>>, %arg2: memref<147x64xbf16, #tpu.memory_space<vmem>>, %arg3: memref<1x64xf32, #tpu.memory_space<vmem>>, %arg4: memref<512x64xf32, #tpu.memory_space<vmem>>) attributes {dimension_semantics = [#tpu.dimension_semantics<parallel>], iteration_bounds = array<i64: 1>, scalar_prefetch = 0 : i64, scratch_operands = 0 : i64, tpu.core_type = #tpu.core_type<tc>, window_params = [{transform_indices = @transform_0, window_bounds = array<i64: 512, 147>}, {pipeline_mode = #tpu.pipeline_mode<synchronous>, transform_indices = @transform_1, window_bounds = array<i64: 147, 64>}, {pipeline_mode = #tpu.pipeline_mode<synchronous>, transform_indices = @transform_2, window_bounds = array<i64: 1, 64>}, {transform_indices = @transform_3, window_bounds = array<i64: 512, 64>}]} {
    %c0 = arith.constant 0 : index
    %c0_0 = arith.constant 0 : index
    %0 = vector.load %arg1[%c0, %c0_0] : memref<512x147xbf16, #tpu.memory_space<vmem>>, vector<512x147xbf16>
    %c0_1 = arith.constant 0 : index
    %c0_2 = arith.constant 0 : index
    %1 = vector.load %arg2[%c0_1, %c0_2] : memref<147x64xbf16, #tpu.memory_space<vmem>>, vector<147x64xbf16>
    %cst = arith.constant dense<0.000000e+00> : vector<512x64xf32>
    %2 = tpu.matmul %0, %1, %cst {dimension_numbers = #tpu.dot_dimension_numbers<[1], [0], [0], [1], [0, 0, 1, 1], [], []>} : vector<512x147xbf16>, vector<147x64xbf16>, vector<512x64xf32> -> vector<512x64xf32>
    %c0_3 = arith.constant 0 : index
    %c0_4 = arith.constant 0 : index
    %3 = vector.load %arg3[%c0_3, %c0_4] : memref<1x64xf32, #tpu.memory_space<vmem>>, vector<1x64xf32>
    %4 = vector.broadcast %3 : vector<1x64xf32> to vector<512x64xf32>
    %5 = arith.addf %2, %4 : vector<512x64xf32>
    %cst_5 = arith.constant 0.000000e+00 : f32
    %6 = vector.broadcast %cst_5 : f32 to vector<512x64xf32>
    %7 = arith.maximumf %5, %6 : vector<512x64xf32>
    %c0_6 = arith.constant 0 : index
    %c0_7 = arith.constant 0 : index
    %8 = vector.load %arg4[%c0_6, %c0_7] : memref<512x64xf32, #tpu.memory_space<vmem>>, vector<512x64xf32>
    tpu.vector_store %arg4[%c0_6, %c0_7], %7 {strides = array<i32>} : memref<512x64xf32, #tpu.memory_space<vmem>>, vector<512x64xf32>,
    return
  }
  func.func @transform_0(%arg0: i32) -> (i32, i32) {
    %c0_i32 = arith.constant 0 : i32
    %c0_i32_0 = arith.constant 0 : i32
    return %arg0, %c0_i32 : i32, i32
  }
  func.func @transform_1(%arg0: i32) -> (i32, i32) {
    %c0_i32 = arith.constant 0 : i32
    %c0_i32_0 = arith.constant 0 : i32
    %c0_i32_1 = arith.constant 0 : i32
    return %c0_i32, %c0_i32_0 : i32, i32
  }
  func.func @transform_2(%arg0: i32) -> (i32, i32) {
    %c0_i32 = arith.constant 0 : i32
    %c0_i32_0 = arith.constant 0 : i32
    %c0_i32_1 = arith.constant 0 : i32
    return %c0_i32, %c0_i32_0 : i32, i32
  }
  func.func @transform_3(%arg0: i32) -> (i32, i32) {
    %c0_i32 = arith.constant 0 : i32
    %c0_i32_0 = arith.constant 0 : i32
    return %arg0, %c0_i32 : i32, i32
  }
}

module attributes {stable_mosaic.version = 11 : i64} {
  func.func @maxpool_3x3_s2_kernel(%arg0: i32, %arg1: memref<4x9x9x64xf32, #tpu.memory_space<vmem>>, %arg2: memref<1x8x8x64xf32, #tpu.memory_space<vmem>>) attributes {dimension_semantics = [#tpu.dimension_semantics<parallel>], iteration_bounds = array<i64: 2>, scalar_prefetch = 0 : i64, scratch_operands = 0 : i64, tpu.core_type = #tpu.core_type<tc>, window_params = [{transform_indices = @transform_0, window_bounds = array<i64: 4, 9, 9, 64>}, {transform_indices = @transform_1, window_bounds = array<i64: 1, 8, 8, 64>}]} {
    %c0 = arith.constant 0 : index
    %c0_0 = arith.constant 0 : index
    %c0_1 = arith.constant 0 : index
    %c0_2 = arith.constant 0 : index
    %0 = vector.load %arg1[%c0, %c0_0, %c0_1, %c0_2] : memref<4x9x9x64xf32, #tpu.memory_space<vmem>>, vector<1x9x9x64xf32>
    %1 = vector.shape_cast %0 : vector<1x9x9x64xf32> to vector<9x9x64xf32>
    %c1 = arith.constant 1 : index
    %c0_3 = arith.constant 0 : index
    %c0_4 = arith.constant 0 : index
    %c0_5 = arith.constant 0 : index
    %2 = vector.load %arg1[%c1, %c0_3, %c0_4, %c0_5] : memref<4x9x9x64xf32, #tpu.memory_space<vmem>>, vector<1x9x9x64xf32>
    %3 = vector.shape_cast %2 : vector<1x9x9x64xf32> to vector<9x9x64xf32>
    %c2 = arith.constant 2 : index
    %c0_6 = arith.constant 0 : index
    %c0_7 = arith.constant 0 : index
    %c0_8 = arith.constant 0 : index
    %4 = vector.load %arg1[%c2, %c0_6, %c0_7, %c0_8] : memref<4x9x9x64xf32, #tpu.memory_space<vmem>>, vector<1x9x9x64xf32>
    %5 = vector.shape_cast %4 : vector<1x9x9x64xf32> to vector<9x9x64xf32>
    %c3 = arith.constant 3 : index
    %c0_9 = arith.constant 0 : index
    %c0_10 = arith.constant 0 : index
    %c0_11 = arith.constant 0 : index
    %6 = vector.load %arg1[%c3, %c0_9, %c0_10, %c0_11] : memref<4x9x9x64xf32, #tpu.memory_space<vmem>>, vector<1x9x9x64xf32>
    %7 = vector.shape_cast %6 : vector<1x9x9x64xf32> to vector<9x9x64xf32>
    %8 = vector.extract_strided_slice %3 {offsets = [0, 0, 0], sizes = [9, 8, 64], strides = [1, 1, 1]} : vector<9x9x64xf32> to vector<9x8x64xf32>
    %9 = vector.extract_strided_slice %3 {offsets = [0, 1, 0], sizes = [9, 8, 64], strides = [1, 1, 1]} : vector<9x9x64xf32> to vector<9x8x64xf32>
    %10 = arith.maximumf %8, %9 : vector<9x8x64xf32>
    %11 = vector.extract_strided_slice %7 {offsets = [0, 0, 0], sizes = [9, 8, 64], strides = [1, 1, 1]} : vector<9x9x64xf32> to vector<9x8x64xf32>
    %12 = vector.extract_strided_slice %7 {offsets = [0, 1, 0], sizes = [9, 8, 64], strides = [1, 1, 1]} : vector<9x9x64xf32> to vector<9x8x64xf32>
    %13 = arith.maximumf %11, %12 : vector<9x8x64xf32>
    %14 = vector.extract_strided_slice %1 {offsets = [0, 1, 0], sizes = [9, 8, 64], strides = [1, 1, 1]} : vector<9x9x64xf32> to vector<9x8x64xf32>
    %15 = arith.maximumf %14, %10 : vector<9x8x64xf32>
    %16 = vector.extract_strided_slice %5 {offsets = [0, 1, 0], sizes = [9, 8, 64], strides = [1, 1, 1]} : vector<9x9x64xf32> to vector<9x8x64xf32>
    %17 = arith.maximumf %16, %13 : vector<9x8x64xf32>
    %18 = vector.extract_strided_slice %15 {offsets = [1, 0, 0], sizes = [8, 8, 64], strides = [1, 1, 1]} : vector<9x8x64xf32> to vector<8x8x64xf32>
    %19 = vector.extract_strided_slice %17 {offsets = [0, 0, 0], sizes = [8, 8, 64], strides = [1, 1, 1]} : vector<9x8x64xf32> to vector<8x8x64xf32>
    %20 = vector.extract_strided_slice %17 {offsets = [1, 0, 0], sizes = [8, 8, 64], strides = [1, 1, 1]} : vector<9x8x64xf32> to vector<8x8x64xf32>
    %21 = arith.maximumf %19, %20 : vector<8x8x64xf32>
    %22 = arith.maximumf %18, %21 : vector<8x8x64xf32>
    %c0_12 = arith.constant 0 : index
    %c0_13 = arith.constant 0 : index
    %c0_14 = arith.constant 0 : index
    %c0_15 = arith.constant 0 : index
    %23 = vector.load %arg2[%c0_12, %c0_13, %c0_14, %c0_15] : memref<1x8x8x64xf32, #tpu.memory_space<vmem>>, vector<1x8x8x64xf32>
    %24 = vector.shape_cast %23 : vector<1x8x8x64xf32> to vector<8x8x64xf32>
    %25 = vector.shape_cast %22 : vector<8x8x64xf32> to vector<1x8x8x64xf32>
    tpu.vector_store %arg2[%c0_12, %c0_13, %c0_14, %c0_15], %25 {strides = array<i32>} : memref<1x8x8x64xf32, #tpu.memory_space<vmem>>, vector<1x8x8x64xf32>,
    return
  }
  func.func @transform_0(%arg0: i32) -> (i32, i32, i32, i32) {
    %c0_i32 = arith.constant 0 : i32
    %c0_i32_0 = arith.constant 0 : i32
    %c0_i32_1 = arith.constant 0 : i32
    %c0_i32_2 = arith.constant 0 : i32
    return %arg0, %c0_i32, %c0_i32_0, %c0_i32_1 : i32, i32, i32, i32
  }
  func.func @transform_1(%arg0: i32) -> (i32, i32, i32, i32) {
    %c0_i32 = arith.constant 0 : i32
    %c0_i32_0 = arith.constant 0 : i32
    %c0_i32_1 = arith.constant 0 : i32
    %c0_i32_2 = arith.constant 0 : i32
    return %arg0, %c0_i32, %c0_i32_0, %c0_i32_1 : i32, i32, i32, i32
  }
}

</mosaic_0001>

<llo_original>
// kernel: new_model_forward.2
$region0: #{new_model_forward.2}
  #allocation0 [shape = 'u32[]', space=smem, size = 0x4, offset = 0x4, fixed_abs, tag = 'smem constant byte address 0x4 - core index']
  #allocation1 [shape = 'u32[144,128]{1,0:T(1,128)}', space=vmem, size = 0x12000, scoped, tag = 'internal scratch']
  %s0 = inlined_call_operand.vmem [shape: bf16[512,147], index: 0, kind: input, shape index: {}]
  %s1 = inlined_call_operand.vmem [shape: bf16[147,64], index: 1, kind: input, shape index: {}]
  %s2 = inlined_call_operand.vmem [shape: f32[1,64], index: 2, kind: input, shape index: {}]
  %s3 = inlined_call_operand.vmem [shape: f32[512,64], index: 3, kind: output, shape index: {}]
  %s4 = sld [smem:[#allocation0]]
  $region22: #{new_model_forward.2} parent=0
    _
  %s6 = ssub.s32 1, %s4
  %s7 = scalar_select 0, %s6, %s4
  // Predicated region
  $region2: #{new_model_forward.2} parent=0 // pred_check
    _
  $region3: #{new_model_forward.2} parent=0 // pred_check_branch
    %9 = sbr.rel (0) target = $region5
  $region4: #{new_model_forward.2} parent=0 // pred_region
    _
  $region5: #{new_model_forward.2} parent=0 // pred_fallthru
    _
  // Predicated region
  $region6: #{new_model_forward.2} parent=0 // pred_check
    _
  $region7: #{new_model_forward.2} parent=0 // pred_check_branch
    %11 = sbr.rel (0) target = $region9
  $region8: #{new_model_forward.2} parent=0 // pred_region
    _
  $region9: #{new_model_forward.2} parent=0 // pred_fallthru
    _
  // Predicated region
  $region10: #{new_model_forward.2} parent=0 // pred_check
    _
  $region11: #{new_model_forward.2} parent=0 // pred_check_branch
    %13 = sbr.rel (0) target = $region13
  $region12: #{new_model_forward.2} parent=0 // pred_region
    _
  $region13: #{new_model_forward.2} parent=0 // pred_fallthru
    _
  %v15 = vld [vmem:[%s0] sm:$0xff]
  %v16 = vld [vmem:[%s0 + $0x8] sm:$0xff]
  %v17 = vld [vmem:[%s0 + $0x10] sm:$0xff]
  %v18 = vld [vmem:[%s0 + $0x18] sm:$0xff]
  %v19 = vld [vmem:[%s0 + $0x20] sm:$0xff]
  %v20 = vld [vmem:[%s0 + $0x28] sm:$0xff]
  %v21 = vld [vmem:[%s0 + $0x30] sm:$0xff]
  %v22 = vld [vmem:[%s0 + $0x38] sm:$0xff]
  %v23 = vld [vmem:[%s0 + $0x40] sm:$0xff]
  %v24 = vld [vmem:[%s0 + $0x48] sm:$0xff]
  %v25 = vld [vmem:[%s0 + $0x50] sm:$0xff]
  %v26 = vld [vmem:[%s0 + $0x58] sm:$0xff]
  %v27 = vld [vmem:[%s0 + $0x60] sm:$0xff]
  %v28 = vld [vmem:[%s0 + $0x68] sm:$0xff]
  %v29 = vld [vmem:[%s0 + $0x70] sm:$0xff]
  %v30 = vld [vmem:[%s0 + $0x78] sm:$0xff]
  %v31 = vld [vmem:[%s0 + $0x80] sm:$0xff]
  %v32 = vld [vmem:[%s0 + $0x88] sm:$0xff]
  %v33 = vld [vmem:[%s0 + $0x90] sm:$0xff]
  %v34 = vld [vmem:[%s0 + $0x98] sm:$0xff]
  %v35 = vld [vmem:[%s0 + $0xa0] sm:$0xff]
  %v36 = vld [vmem:[%s0 + $0xa8] sm:$0xff]
  %v37 = vld [vmem:[%s0 + $0xb0] sm:$0xff]
  %v38 = vld [vmem:[%s0 + $0xb8] sm:$0xff]
  %v39 = vld [vmem:[%s0 + $0xc0] sm:$0xff]
  %v40 = vld [vmem:[%s0 + $0xc8] sm:$0xff]
  %v41 = vld [vmem:[%s0 + $0xd0] sm:$0xff]
  %v42 = vld [vmem:[%s0 + $0xd8] sm:$0xff]
  %v43 = vld [vmem:[%s0 + $0xe0] sm:$0xff]
  %v44 = vld [vmem:[%s0 + $0xe8] sm:$0xff]
  %v45 = vld [vmem:[%s0 + $0xf0] sm:$0xff]
  %v46 = vld [vmem:[%s0 + $0xf8] sm:$0xff]
  %v47 = vld [vmem:[%s0 + $0x100] sm:$0xff]
  %v48 = vld [vmem:[%s0 + $0x108] sm:$0xff]
  %v49 = vld [vmem:[%s0 + $0x110] sm:$0xff]
  %v50 = vld [vmem:[%s0 + $0x118] sm:$0xff]
  %v51 = vld [vmem:[%s0 + $0x120] sm:$0xff]
  %v52 = vld [vmem:[%s0 + $0x128] sm:$0xff]
  %v53 = vld [vmem:[%s0 + $0x130] sm:$0xff]
  %v54 = vld [vmem:[%s0 + $0x138] sm:$0xff]
  %v55 = vld [vmem:[%s0 + $0x140] sm:$0xff]
  %v56 = vld [vmem:[%s0 + $0x148] sm:$0xff]
  %v57 = vld [vmem:[%s0 + $0x150] sm:$0xff]
  %v58 = vld [vmem:[%s0 + $0x158] sm:$0xff]
  %v59 = vld [vmem:[%s0 + $0x160] sm:$0xff]
  %v60 = vld [vmem:[%s0 + $0x168] sm:$0xff]
  %v61 = vld [vmem:[%s0 + $0x170] sm:$0xff]
  %v62 = vld [vmem:[%s0 + $0x178] sm:$0xff]
  %v63 = vld [vmem:[%s0 + $0x180] sm:$0xff]
  %v64 = vld [vmem:[%s0 + $0x188] sm:$0xff]
  %v65 = vld [vmem:[%s0 + $0x190] sm:$0xff]
  %v66 = vld [vmem:[%s0 + $0x198] sm:$0xff]
  %v67 = vld [vmem:[%s0 + $0x1a0] sm:$0xff]
  %v68 = vld [vmem:[%s0 + $0x1a8] sm:$0xff]
  %v69 = vld [vmem:[%s0 + $0x1b0] sm:$0xff]
  %v70 = vld [vmem:[%s0 + $0x1b8] sm:$0xff]
  %v71 = vld [vmem:[%s0 + $0x1c0] sm:$0xff]
  %v72 = vld [vmem:[%s0 + $0x1c8] sm:$0xff]
  %v73 = vld [vmem:[%s0 + $0x1d0] sm:$0xff]
  %v74 = vld [vmem:[%s0 + $0x1d8] sm:$0xff]
  %v75 = vld [vmem:[%s0 + $0x1e0] sm:$0xff]
  %v76 = vld [vmem:[%s0 + $0x1e8] sm:$0xff]
  %v77 = vld [vmem:[%s0 + $0x1f0] sm:$0xff]
  %v78 = vld [vmem:[%s0 + $0x1f8] sm:$0xff]
  %v79 = vld [vmem:[%s1] sm:$0xf]
  %v80 = vld [vmem:[%s1 + $0x4] sm:$0xf]
  %v81 = vld [vmem:[%s1 + $0x8] sm:$0xf]
  %v82 = vld [vmem:[%s1 + $0xc] sm:$0xf]
  %v83 = vld [vmem:[%s1 + $0x10] sm:$0xf]
  %v84 = vld [vmem:[%s1 + $0x14] sm:$0xf]
  %v85 = vld [vmem:[%s1 + $0x18] sm:$0xf]
  %v86 = vld [vmem:[%s1 + $0x1c] sm:$0xf]
  %v87 = vld [vmem:[%s1 + $0x20] sm:$0xf]
  %v88 = vld [vmem:[%s1 + $0x24] sm:$0xf]
  %v89 = vld [vmem:[%s1 + $0x28] sm:$0xf]
  %v90 = vld [vmem:[%s1 + $0x2c] sm:$0xf]
  %v91 = vld [vmem:[%s1 + $0x30] sm:$0xf]
  %v92 = vld [vmem:[%s1 + $0x34] sm:$0xf]
  %v93 = vld [vmem:[%s1 + $0x38] sm:$0xf]
  %v94 = vld [vmem:[%s1 + $0x3c] sm:$0xf]
  %v95 = vld [vmem:[%s1 + $0x40] sm:$0xf]
  %v96 = vld [vmem:[%s1 + $0x44] sm:$0xf]
  %v97 = vld [vmem:[%s1 + $0x48] sm:$0x3]
  %v98 = vld [vmem:[%s2] sm:$0x1]
  %v100 = vlaneseq
  %v101 = vshrl.u32 %v100, 7
  %v102 = vsub.s32 0, %v101
  %v103 = vrot.slane %v98, %v102
  %v169 = vunpack.c.l.b16 %v15
  %v170 = vunpack.c.h.b16 %v15
  %v171 = vunpack.c.l.b16 %v16
  %v172 = vunpack.c.h.b16 %v16
  %v173 = vunpack.c.l.b16 %v17
  %v174 = vunpack.c.h.b16 %v17
  %v175 = vunpack.c.l.b16 %v18
  %v176 = vunpack.c.h.b16 %v18
  %v177 = vunpack.c.l.b16 %v19
  %v178 = vunpack.c.h.b16 %v19
  %v179 = vunpack.c.l.b16 %v20
  %v180 = vunpack.c.h.b16 %v20
  %v181 = vunpack.c.l.b16 %v21
  %v182 = vunpack.c.h.b16 %v21
  %v183 = vunpack.c.l.b16 %v22
  %v184 = vunpack.c.h.b16 %v22
  %v185 = vunpack.c.l.b16 %v23
  %v186 = vunpack.c.h.b16 %v23
  %v187 = vunpack.c.l.b16 %v24
  %v188 = vunpack.c.h.b16 %v24
  %v189 = vunpack.c.l.b16 %v25
  %v190 = vunpack.c.h.b16 %v25
  %v191 = vunpack.c.l.b16 %v26
  %v192 = vunpack.c.h.b16 %v26
  %v193 = vunpack.c.l.b16 %v27
  %v194 = vunpack.c.h.b16 %v27
  %v195 = vunpack.c.l.b16 %v28
  %v196 = vunpack.c.h.b16 %v28
  %v197 = vunpack.c.l.b16 %v29
  %v198 = vunpack.c.h.b16 %v29
  %v199 = vunpack.c.l.b16 %v30
  %v200 = vunpack.c.h.b16 %v30
  %v201 = vunpack.c.l.b16 %v31
  %v202 = vunpack.c.h.b16 %v31
  %v203 = vunpack.c.l.b16 %v32
  %v204 = vunpack.c.h.b16 %v32
  %v205 = vunpack.c.l.b16 %v33
  %v206 = vunpack.c.h.b16 %v33
  %v207 = vunpack.c.l.b16 %v34
  %v208 = vunpack.c.h.b16 %v34
  %v209 = vunpack.c.l.b16 %v35
  %v210 = vunpack.c.h.b16 %v35
  %v211 = vunpack.c.l.b16 %v36
  %v212 = vunpack.c.h.b16 %v36
  %v213 = vunpack.c.l.b16 %v37
  %v214 = vunpack.c.h.b16 %v37
  %v215 = vunpack.c.l.b16 %v38
  %v216 = vunpack.c.h.b16 %v38
  %v217 = vunpack.c.l.b16 %v39
  %v218 = vunpack.c.h.b16 %v39
  %v219 = vunpack.c.l.b16 %v40
  %v220 = vunpack.c.h.b16 %v40
  %v221 = vunpack.c.l.b16 %v41
  %v222 = vunpack.c.h.b16 %v41
  %v223 = vunpack.c.l.b16 %v42
  %v224 = vunpack.c.h.b16 %v42
  %v225 = vunpack.c.l.b16 %v43
  %v226 = vunpack.c.h.b16 %v43
  %v227 = vunpack.c.l.b16 %v44
  %v228 = vunpack.c.h.b16 %v44
  %v229 = vunpack.c.l.b16 %v45
  %v230 = vunpack.c.h.b16 %v45
  %v231 = vunpack.c.l.b16 %v46
  %v232 = vunpack.c.h.b16 %v46
  %v233 = vunpack.c.l.b16 %v47
  %v234 = vunpack.c.h.b16 %v47
  %v235 = vunpack.c.l.b16 %v48
  %v236 = vunpack.c.h.b16 %v48
  %v237 = vunpack.c.l.b16 %v49
  %v238 = vunpack.c.h.b16 %v49
  %v239 = vunpack.c.l.b16 %v50
  %v240 = vunpack.c.h.b16 %v50
  %v241 = vunpack.c.l.b16 %v51
  %v242 = vunpack.c.h.b16 %v51
  %v243 = vunpack.c.l.b16 %v52
  %v244 = vunpack.c.h.b16 %v52
  %v245 = vunpack.c.l.b16 %v53
  %v246 = vunpack.c.h.b16 %v53
  %v247 = vunpack.c.l.b16 %v54
  %v248 = vunpack.c.h.b16 %v54
  %v249 = vunpack.c.l.b16 %v55
  %v250 = vunpack.c.h.b16 %v55
  %v251 = vunpack.c.l.b16 %v56
  %v252 = vunpack.c.h.b16 %v56
  %v253 = vunpack.c.l.b16 %v57
  %v254 = vunpack.c.h.b16 %v57
  %v255 = vunpack.c.l.b16 %v58
  %v256 = vunpack.c.h.b16 %v58
  %v257 = vunpack.c.l.b16 %v59
  %v258 = vunpack.c.h.b16 %v59
  %v259 = vunpack.c.l.b16 %v60
  %v260 = vunpack.c.h.b16 %v60
  %v261 = vunpack.c.l.b16 %v61
  %v262 = vunpack.c.h.b16 %v61
  %v263 = vunpack.c.l.b16 %v62
  %v264 = vunpack.c.h.b16 %v62
  %v265 = vunpack.c.l.b16 %v63
  %v266 = vunpack.c.h.b16 %v63
  %v267 = vunpack.c.l.b16 %v64
  %v268 = vunpack.c.h.b16 %v64
  %v269 = vunpack.c.l.b16 %v65
  %v270 = vunpack.c.h.b16 %v65
  %v271 = vunpack.c.l.b16 %v66
  %v272 = vunpack.c.h.b16 %v66
  %v273 = vunpack.c.l.b16 %v67
  %v274 = vunpack.c.h.b16 %v67
  %v275 = vunpack.c.l.b16 %v68
  %v276 = vunpack.c.h.b16 %v68
  %v277 = vunpack.c.l.b16 %v69
  %v278 = vunpack.c.h.b16 %v69
  %v279 = vunpack.c.l.b16 %v70
  %v280 = vunpack.c.h.b16 %v70
  %v281 = vunpack.c.l.b16 %v71
  %v282 = vunpack.c.h.b16 %v71
  %v283 = vunpack.c.l.b16 %v72
  %v284 = vunpack.c.h.b16 %v72
  %v285 = vunpack.c.l.b16 %v73
  %v286 = vunpack.c.h.b16 %v73
  %v287 = vunpack.c.l.b16 %v74
  %v288 = vunpack.c.h.b16 %v74
  %v289 = vunpack.c.l.b16 %v75
  %v290 = vunpack.c.h.b16 %v75
  %v291 = vunpack.c.l.b16 %v76
  %v292 = vunpack.c.h.b16 %v76
  %v293 = vunpack.c.l.b16 %v77
  %v294 = vunpack.c.h.b16 %v77
  %v295 = vunpack.c.l.b16 %v78
  %v296 = vunpack.c.h.b16 %v78
  %v297 = vpack.c.b16 %v171, %v169
  %v298 = vpack.c.b16 %v172, %v170
  %v299 = vpack.c.b16 %v175, %v173
  %v300 = vpack.c.b16 %v176, %v174
  %v301 = vpack.c.b16 %v179, %v177
  %v302 = vpack.c.b16 %v180, %v178
  %v303 = vpack.c.b16 %v183, %v181
  %v304 = vpack.c.b16 %v184, %v182
  %v305 = vpack.c.b16 %v187, %v185
  %v306 = vpack.c.b16 %v188, %v186
  %v307 = vpack.c.b16 %v191, %v189
  %v308 = vpack.c.b16 %v192, %v190
  %v309 = vpack.c.b16 %v195, %v193
  %v310 = vpack.c.b16 %v196, %v194
  %v311 = vpack.c.b16 %v199, %v197
  %v312 = vpack.c.b16 %v200, %v198
  %v313 = vpack.c.b16 %v203, %v201
  %v314 = vpack.c.b16 %v204, %v202
  %v315 = vpack.c.b16 %v207, %v205
  %v316 = vpack.c.b16 %v208, %v206
  %v317 = vpack.c.b16 %v211, %v209
  %v318 = vpack.c.b16 %v212, %v210
  %v319 = vpack.c.b16 %v215, %v213
  %v320 = vpack.c.b16 %v216, %v214
  %v321 = vpack.c.b16 %v219, %v217
  %v322 = vpack.c.b16 %v220, %v218
  %v323 = vpack.c.b16 %v223, %v221
  %v324 = vpack.c.b16 %v224, %v222
  %v325 = vpack.c.b16 %v227, %v225
  %v326 = vpack.c.b16 %v228, %v226
  %v327 = vpack.c.b16 %v231, %v229
  %v328 = vpack.c.b16 %v232, %v230
  %v329 = vpack.c.b16 %v235, %v233
  %v330 = vpack.c.b16 %v236, %v234
  %v331 = vpack.c.b16 %v239, %v237
  %v332 = vpack.c.b16 %v240, %v238
  %v333 = vpack.c.b16 %v243, %v241
  %v334 = vpack.c.b16 %v244, %v242
  %v335 = vpack.c.b16 %v247, %v245
  %v336 = vpack.c.b16 %v248, %v246
  %v337 = vpack.c.b16 %v251, %v249
  %v338 = vpack.c.b16 %v252, %v250
  %v339 = vpack.c.b16 %v255, %v253
  %v340 = vpack.c.b16 %v256, %v254
  %v341 = vpack.c.b16 %v259, %v257
  %v342 = vpack.c.b16 %v260, %v258
  %v343 = vpack.c.b16 %v263, %v261
  %v344 = vpack.c.b16 %v264, %v262
  %v345 = vpack.c.b16 %v267, %v265
  %v346 = vpack.c.b16 %v268, %v266
  %v347 = vpack.c.b16 %v271, %v269
  %v348 = vpack.c.b16 %v272, %v270
  %v349 = vpack.c.b16 %v275, %v273
  %v350 = vpack.c.b16 %v276, %v274
  %v351 = vpack.c.b16 %v279, %v277
  %v352 = vpack.c.b16 %v280, %v278
  %v353 = vpack.c.b16 %v283, %v281
  %v354 = vpack.c.b16 %v284, %v282
  %v355 = vpack.c.b16 %v287, %v285
  %v356 = vpack.c.b16 %v288, %v286
  %v357 = vpack.c.b16 %v291, %v289
  %v358 = vpack.c.b16 %v292, %v290
  %v359 = vpack.c.b16 %v295, %v293
  %v360 = vpack.c.b16 %v296, %v294
  %v412 = vunpack.c.l.b16 %v79
  %v413 = vunpack.c.l.b16 %v80
  %v414 = vunpack.c.l.b16 %v81
  %v415 = vunpack.c.l.b16 %v82
  %v416 = vunpack.c.l.b16 %v83
  %v417 = vunpack.c.l.b16 %v84
  %v418 = vunpack.c.l.b16 %v85
  %v419 = vunpack.c.l.b16 %v86
  %v420 = vunpack.c.l.b16 %v87
  %v421 = vunpack.c.l.b16 %v88
  %v422 = vunpack.c.l.b16 %v89
  %v423 = vunpack.c.l.b16 %v90
  %v424 = vunpack.c.l.b16 %v91
  %v425 = vunpack.c.l.b16 %v92
  %v426 = vunpack.c.l.b16 %v93
  %v427 = vunpack.c.l.b16 %v94
  %v428 = vunpack.c.l.b16 %v95
  %v429 = vunpack.c.l.b16 %v96
  %v430 = vunpack.c.l.b16 %v97
  %v431 = vpack.c.b16 %v413, %v412
  %v432 = vpack.c.b16 %v415, %v414
  %v433 = vpack.c.b16 %v417, %v416
  %v434 = vpack.c.b16 %v419, %v418
  %v435 = vpack.c.b16 %v421, %v420
  %v436 = vpack.c.b16 %v423, %v422
  %v437 = vpack.c.b16 %v425, %v424
  %v438 = vpack.c.b16 %v427, %v426
  %v439 = vpack.c.b16 %v429, %v428
  %v440 = vpack.c.b16 %v430, %v430
  %vm450 = vcmask 154624
  %v452 = vsel %vm450, %v298, 0
  %v455 = vsel %vm450, %v300, 0
  %v458 = vsel %vm450, %v302, 0
  %v461 = vsel %vm450, %v304, 0
  %v464 = vsel %vm450, %v306, 0
  %v467 = vsel %vm450, %v308, 0
  %v470 = vsel %vm450, %v310, 0
  %v473 = vsel %vm450, %v312, 0
  %v476 = vsel %vm450, %v314, 0
  %v479 = vsel %vm450, %v316, 0
  %v482 = vsel %vm450, %v318, 0
  %v485 = vsel %vm450, %v320, 0
  %v488 = vsel %vm450, %v322, 0
  %v491 = vsel %vm450, %v324, 0
  %v494 = vsel %vm450, %v326, 0
  %v497 = vsel %vm450, %v328, 0
  %v500 = vsel %vm450, %v330, 0
  %v503 = vsel %vm450, %v332, 0
  %v506 = vsel %vm450, %v334, 0
  %v509 = vsel %vm450, %v336, 0
  %v512 = vsel %vm450, %v338, 0
  %v515 = vsel %vm450, %v340, 0
  %v518 = vsel %vm450, %v342, 0
  %v521 = vsel %vm450, %v344, 0
  %v524 = vsel %vm450, %v346, 0
  %v527 = vsel %vm450, %v348, 0
  %v530 = vsel %vm450, %v350, 0
  %v533 = vsel %vm450, %v352, 0
  %v536 = vsel %vm450, %v354, 0
  %v539 = vsel %vm450, %v356, 0
  %v542 = vsel %vm450, %v358, 0
  %v545 = vsel %vm450, %v360, 0
  %vm547 = vcmask 1040384
  %vm548 = vcmask 1041408
  %v549 = vsel %vm547, 4294967295, 65535
  %v550 = vsel %vm548, %v549, 0
  %v552 = vand.u32 %v440, %v550
  %554 = vmatprep.subr.bf16.mxu0 0
  %555 = vmatpush1.bf16.msra.mxu0 %v431
  %556 = vmatprep.subr.bf16.mxu0 0
  %557 = vmatpush1.bf16.msra.mxu0 %v432
  %558 = vmatprep.subr.bf16.mxu0 0
  %559 = vmatpush1.bf16.msra.mxu0 %v433
  %560 = vmatprep.subr.bf16.mxu0 0
  %561 = vmatpush1.bf16.msra.mxu0 %v434
  %562 = vmatprep.subr.bf16.mxu0 0
  %563 = vmatpush1.bf16.msra.mxu0 %v435
  %564 = vmatprep.subr.bf16.mxu0 0
  %565 = vmatpush1.bf16.msra.mxu0 %v436
  %566 = vmatprep.subr.bf16.mxu0 0
  %567 = vmatpush1.bf16.msra.mxu0 %v437
  %568 = vmatprep.subr.bf16.mxu0 0
  %569 = vmatpush1.bf16.msra.mxu0 %v438
  %570 = vmatprep.subr.bf16.mxu0 0
  %571 = vmatpush1.bf16.msra.mxu0 %v439
  %572 = vmatprep.subr.bf16.mxu0 0
  %573 = vmatpush1.bf16.msra.mxu0 %v552
  %574 = vmatprep.subr.bf16.mxu0 0
  %575 = vmatpush1.bf16.msra.mxu0 0
  %576 = vmatprep.subr.bf16.mxu0 0
  %577 = vmatpush1.bf16.msra.mxu0 0
  %578 = vmatprep.subr.bf16.mxu0 0
  %579 = vmatpush1.bf16.msra.mxu0 0
  %580 = vmatprep.subr.bf16.mxu0 0
  %581 = vmatpush1.bf16.msra.mxu0 0
  %582 = vmatprep.subr.bf16.mxu0 0
  %583 = vmatpush1.bf16.msra.mxu0 0
  %584 = vmatprep.subr.bf16.mxu0 0
  %585 = vmatpush1.bf16.msra.mxu0 0
  %586 = vmatprep.mubr.bf16.mxu0 %v452
  %587 = vmatmul.mubr.bf16.gmra.mrb[0].mxu0 %v297
  %v588 = vpop.f32.mrb[0].mxu0
  %v589 = vadd.f32 %v103, %v588
  %v590 = vpop.f32.mrb[0].mxu0
  %v591 = vpop.f32.mrb[0].mxu0
  %v592 = vadd.f32 %v103, %v591
  %v593 = vpop.f32.mrb[0].mxu0
  %594 = vmatprep.mubr.bf16.mxu0 %v455
  %595 = vmatmul.mubr.bf16.gmra.mrb[0].mxu0 %v299
  %v596 = vpop.f32.mrb[0].mxu0
  %v597 = vadd.f32 %v103, %v596
  %v598 = vpop.f32.mrb[0].mxu0
  %v599 = vpop.f32.mrb[0].mxu0
  %v600 = vadd.f32 %v103, %v599
  %v601 = vpop.f32.mrb[0].mxu0
  %602 = vmatprep.mubr.bf16.mxu0 %v458
  %603 = vmatmul.mubr.bf16.gmra.mrb[0].mxu0 %v301
  %v604 = vpop.f32.mrb[0].mxu0
  %v605 = vadd.f32 %v103, %v604
  %v606 = vpop.f32.mrb[0].mxu0
  %v607 = vpop.f32.mrb[0].mxu0
  %v608 = vadd.f32 %v103, %v607
  %v609 = vpop.f32.mrb[0].mxu0
  %610 = vmatprep.mubr.bf16.mxu0 %v461
  %611 = vmatmul.mubr.bf16.gmra.mrb[0].mxu0 %v303
  %v612 = vpop.f32.mrb[0].mxu0
  %v613 = vadd.f32 %v103, %v612
  %v614 = vpop.f32.mrb[0].mxu0
  %v615 = vpop.f32.mrb[0].mxu0
  %v616 = vadd.f32 %v103, %v615
  %v617 = vpop.f32.mrb[0].mxu0
  %618 = vmatprep.mubr.bf16.mxu0 %v464
  %619 = vmatmul.mubr.bf16.gmra.mrb[0].mxu0 %v305
  %v620 = vpop.f32.mrb[0].mxu0
  %v621 = vadd.f32 %v103, %v620
  %v622 = vpop.f32.mrb[0].mxu0
  %v623 = vpop.f32.mrb[0].mxu0
  %v624 = vadd.f32 %v103, %v623
  %v625 = vpop.f32.mrb[0].mxu0
  %626 = vmatprep.mubr.bf16.mxu0 %v467
  %627 = vmatmul.mubr.bf16.gmra.mrb[0].mxu0 %v307
  %v628 = vpop.f32.mrb[0].mxu0
  %v629 = vadd.f32 %v103, %v628
  %v630 = vpop.f32.mrb[0].mxu0
  %v631 = vpop.f32.mrb[0].mxu0
  %v632 = vadd.f32 %v103, %v631
  %v633 = vpop.f32.mrb[0].mxu0
  %634 = vmatprep.mubr.bf16.mxu0 %v470
  %635 = vmatmul.mubr.bf16.gmra.mrb[0].mxu0 %v309
  %v636 = vpop.f32.mrb[0].mxu0
  %v637 = vadd.f32 %v103, %v636
  %v638 = vpop.f32.mrb[0].mxu0
  %v639 = vpop.f32.mrb[0].mxu0
  %v640 = vadd.f32 %v103, %v639
  %v641 = vpop.f32.mrb[0].mxu0
  %642 = vmatprep.mubr.bf16.mxu0 %v473
  %643 = vmatmul.mubr.bf16.gmra.mrb[0].mxu0 %v311
  %v644 = vpop.f32.mrb[0].mxu0
  %v645 = vadd.f32 %v103, %v644
  %v646 = vpop.f32.mrb[0].mxu0
  %v647 = vpop.f32.mrb[0].mxu0
  %v648 = vadd.f32 %v103, %v647
  %v649 = vpop.f32.mrb[0].mxu0
  %650 = vmatprep.mubr.bf16.mxu0 %v476
  %651 = vmatmul.mubr.bf16.gmra.mrb[0].mxu0 %v313
  %v652 = vpop.f32.mrb[0].mxu0
  %v653 = vadd.f32 %v103, %v652
  %v654 = vpop.f32.mrb[0].mxu0
  %v655 = vpop.f32.mrb[0].mxu0
  %v656 = vadd.f32 %v103, %v655
  %v657 = vpop.f32.mrb[0].mxu0
  %658 = vmatprep.mubr.bf16.mxu0 %v479
  %659 = vmatmul.mubr.bf16.gmra.mrb[0].mxu0 %v315
  %v660 = vpop.f32.mrb[0].mxu0
  %v661 = vadd.f32 %v103, %v660
  %v662 = vpop.f32.mrb[0].mxu0
  %v663 = vpop.f32.mrb[0].mxu0
  %v664 = vadd.f32 %v103, %v663
  %v665 = vpop.f32.mrb[0].mxu0
  %666 = vmatprep.mubr.bf16.mxu0 %v482
  %667 = vmatmul.mubr.bf16.gmra.mrb[0].mxu0 %v317
  %v668 = vpop.f32.mrb[0].mxu0
  %v669 = vadd.f32 %v103, %v668
  %v670 = vpop.f32.mrb[0].mxu0
  %v671 = vpop.f32.mrb[0].mxu0
  %v672 = vadd.f32 %v103, %v671
  %v673 = vpop.f32.mrb[0].mxu0
  %674 = vmatprep.mubr.bf16.mxu0 %v485
  %675 = vmatmul.mubr.bf16.gmra.mrb[0].mxu0 %v319
  %v676 = vpop.f32.mrb[0].mxu0
  %v677 = vadd.f32 %v103, %v676
  %v678 = vpop.f32.mrb[0].mxu0
  %v679 = vpop.f32.mrb[0].mxu0
  %v680 = vadd.f32 %v103, %v679
  %v681 = vpop.f32.mrb[0].mxu0
  %682 = vmatprep.mubr.bf16.mxu0 %v488
  %683 = vmatmul.mubr.bf16.gmra.mrb[0].mxu0 %v321
  %v684 = vpop.f32.mrb[0].mxu0
  %v685 = vadd.f32 %v103, %v684
  %v686 = vpop.f32.mrb[0].mxu0
  %v687 = vpop.f32.mrb[0].mxu0
  %v688 = vadd.f32 %v103, %v687
  %v689 = vpop.f32.mrb[0].mxu0
  %690 = vmatprep.mubr.bf16.mxu0 %v491
  %691 = vmatmul.mubr.bf16.gmra.mrb[0].mxu0 %v323
  %v692 = vpop.f32.mrb[0].mxu0
  %v693 = vadd.f32 %v103, %v692
  %v694 = vpop.f32.mrb[0].mxu0
  %v695 = vpop.f32.mrb[0].mxu0
  %v696 = vadd.f32 %v103, %v695
  %v697 = vpop.f32.mrb[0].mxu0
  %698 = vmatprep.mubr.bf16.mxu0 %v494
  %699 = vmatmul.mubr.bf16.gmra.mrb[0].mxu0 %v325
  %v700 = vpop.f32.mrb[0].mxu0
  %v701 = vadd.f32 %v103, %v700
  %v702 = vpop.f32.mrb[0].mxu0
  %v703 = vpop.f32.mrb[0].mxu0
  %v704 = vadd.f32 %v103, %v703
  %v705 = vpop.f32.mrb[0].mxu0
  %706 = vmatprep.mubr.bf16.mxu0 %v497
  %707 = vmatmul.mubr.bf16.gmra.mrb[0].mxu0 %v327
  %v708 = vpop.f32.mrb[0].mxu0
  %v709 = vadd.f32 %v103, %v708
  %v710 = vpop.f32.mrb[0].mxu0
  %v711 = vpop.f32.mrb[0].mxu0
  %v712 = vadd.f32 %v103, %v711
  %v713 = vpop.f32.mrb[0].mxu0
  %714 = vmatprep.mubr.bf16.mxu0 %v500
  %715 = vmatmul.mubr.bf16.gmra.mrb[0].mxu0 %v329
  %v716 = vpop.f32.mrb[0].mxu0
  %v717 = vadd.f32 %v103, %v716
  %v718 = vpop.f32.mrb[0].mxu0
  %v719 = vpop.f32.mrb[0].mxu0
  %v720 = vadd.f32 %v103, %v719
  %v721 = vpop.f32.mrb[0].mxu0
  %722 = vmatprep.mubr.bf16.mxu0 %v503
  %723 = vmatmul.mubr.bf16.gmra.mrb[0].mxu0 %v331
  %v724 = vpop.f32.mrb[0].mxu0
  %v725 = vadd.f32 %v103, %v724
  %v726 = vpop.f32.mrb[0].mxu0
  %v727 = vpop.f32.mrb[0].mxu0
  %v728 = vadd.f32 %v103, %v727
  %v729 = vpop.f32.mrb[0].mxu0
  %730 = vmatprep.mubr.bf16.mxu0 %v506
  %731 = vmatmul.mubr.bf16.gmra.mrb[0].mxu0 %v333
  %v732 = vpop.f32.mrb[0].mxu0
  %v733 = vadd.f32 %v103, %v732
  %v734 = vpop.f32.mrb[0].mxu0
  %v735 = vpop.f32.mrb[0].mxu0
  %v736 = vadd.f32 %v103, %v735
  %v737 = vpop.f32.mrb[0].mxu0
  %738 = vmatprep.mubr.bf16.mxu0 %v509
  %739 = vmatmul.mubr.bf16.gmra.mrb[0].mxu0 %v335
  %v740 = vpop.f32.mrb[0].mxu0
  %v741 = vadd.f32 %v103, %v740
  %v742 = vpop.f32.mrb[0].mxu0
  %v743 = vpop.f32.mrb[0].mxu0
  %v744 = vadd.f32 %v103, %v743
  %v745 = vpop.f32.mrb[0].mxu0
  %746 = vmatprep.mubr.bf16.mxu0 %v512
  %747 = vmatmul.mubr.bf16.gmra.mrb[0].mxu0 %v337
  %v748 = vpop.f32.mrb[0].mxu0
  %v749 = vadd.f32 %v103, %v748
  %v750 = vpop.f32.mrb[0].mxu0
  %v751 = vpop.f32.mrb[0].mxu0
  %v752 = vadd.f32 %v103, %v751
  %v753 = vpop.f32.mrb[0].mxu0
  %754 = vmatprep.mubr.bf16.mxu0 %v515
  %755 = vmatmul.mubr.bf16.gmra.mrb[0].mxu0 %v339
  %v756 = vpop.f32.mrb[0].mxu0
  %v757 = vadd.f32 %v103, %v756
  %v758 = vpop.f32.mrb[0].mxu0
  %v759 = vpop.f32.mrb[0].mxu0
  %v760 = vadd.f32 %v103, %v759
  %v761 = vpop.f32.mrb[0].mxu0
  %762 = vmatprep.mubr.bf16.mxu0 %v518
  %763 = vmatmul.mubr.bf16.gmra.mrb[0].mxu0 %v341
  %v764 = vpop.f32.mrb[0].mxu0
  %v765 = vadd.f32 %v103, %v764
  %v766 = vpop.f32.mrb[0].mxu0
  %v767 = vpop.f32.mrb[0].mxu0
  %v768 = vadd.f32 %v103, %v767
  %v769 = vpop.f32.mrb[0].mxu0
  %770 = vmatprep.mubr.bf16.mxu0 %v521
  %771 = vmatmul.mubr.bf16.gmra.mrb[0].mxu0 %v343
  %v772 = vpop.f32.mrb[0].mxu0
  %v773 = vadd.f32 %v103, %v772
  %v774 = vpop.f32.mrb[0].mxu0
  %v775 = vpop.f32.mrb[0].mxu0
  %v776 = vadd.f32 %v103, %v775
  %v777 = vpop.f32.mrb[0].mxu0
  %778 = vmatprep.mubr.bf16.mxu0 %v524
  %779 = vmatmul.mubr.bf16.gmra.mrb[0].mxu0 %v345
  %v780 = vpop.f32.mrb[0].mxu0
  %v781 = vadd.f32 %v103, %v780
  %v782 = vpop.f32.mrb[0].mxu0
  %v783 = vpop.f32.mrb[0].mxu0
  %v784 = vadd.f32 %v103, %v783
  %v785 = vpop.f32.mrb[0].mxu0
  %786 = vmatprep.mubr.bf16.mxu0 %v527
  %787 = vmatmul.mubr.bf16.gmra.mrb[0].mxu0 %v347
  %v788 = vpop.f32.mrb[0].mxu0
  %v789 = vadd.f32 %v103, %v788
  %v790 = vpop.f32.mrb[0].mxu0
  %v791 = vpop.f32.mrb[0].mxu0
  %v792 = vadd.f32 %v103, %v791
  %v793 = vpop.f32.mrb[0].mxu0
  %794 = vmatprep.mubr.bf16.mxu0 %v530
  %795 = vmatmul.mubr.bf16.gmra.mrb[0].mxu0 %v349
  %v796 = vpop.f32.mrb[0].mxu0
  %v797 = vadd.f32 %v103, %v796
  %v798 = vpop.f32.mrb[0].mxu0
  %v799 = vpop.f32.mrb[0].mxu0
  %v800 = vadd.f32 %v103, %v799
  %v801 = vpop.f32.mrb[0].mxu0
  %802 = vmatprep.mubr.bf16.mxu0 %v533
  %803 = vmatmul.mubr.bf16.gmra.mrb[0].mxu0 %v351
  %v804 = vpop.f32.mrb[0].mxu0
  %v805 = vadd.f32 %v103, %v804
  %v806 = vpop.f32.mrb[0].mxu0
  %v807 = vpop.f32.mrb[0].mxu0
  %v808 = vadd.f32 %v103, %v807
  %v809 = vpop.f32.mrb[0].mxu0
  %810 = vmatprep.mubr.bf16.mxu0 %v536
  %811 = vmatmul.mubr.bf16.gmra.mrb[0].mxu0 %v353
  %v812 = vpop.f32.mrb[0].mxu0
  %v813 = vadd.f32 %v103, %v812
  %v814 = vpop.f32.mrb[0].mxu0
  %v815 = vpop.f32.mrb[0].mxu0
  %v816 = vadd.f32 %v103, %v815
  %v817 = vpop.f32.mrb[0].mxu0
  %818 = vmatprep.mubr.bf16.mxu0 %v539
  %819 = vmatmul.mubr.bf16.gmra.mrb[0].mxu0 %v355
  %v820 = vpop.f32.mrb[0].mxu0
  %v821 = vadd.f32 %v103, %v820
  %v822 = vpop.f32.mrb[0].mxu0
  %v823 = vpop.f32.mrb[0].mxu0
  %v824 = vadd.f32 %v103, %v823
  %v825 = vpop.f32.mrb[0].mxu0
  %826 = vmatprep.mubr.bf16.mxu0 %v542
  %827 = vmatmul.mubr.bf16.gmra.mrb[0].mxu0 %v357
  %v828 = vpop.f32.mrb[0].mxu0
  %v829 = vadd.f32 %v103, %v828
  %v830 = vpop.f32.mrb[0].mxu0
  %v831 = vpop.f32.mrb[0].mxu0
  %v832 = vadd.f32 %v103, %v831
  %v833 = vpop.f32.mrb[0].mxu0
  %834 = vmatprep.mubr.bf16.mxu0 %v545
  %835 = vmatmul.mubr.bf16.gmra.mrb[0].mxu0 %v359
  %v836 = vpop.f32.mrb[0].mxu0
  %v837 = vadd.f32 %v103, %v836
  %v838 = vpop.f32.mrb[0].mxu0
  %v839 = vpop.f32.mrb[0].mxu0
  %v840 = vadd.f32 %v103, %v839
  %v841 = vpop.f32.mrb[0].mxu0
  %842 = vdwg.mxu0
  %v843 = vmax.f32 %v589, 0.0
  %v844 = vmax.f32 %v592, 0.0
  %v845 = vmax.f32 %v597, 0.0
  %v846 = vmax.f32 %v600, 0.0
  %v847 = vmax.f32 %v605, 0.0
  %v848 = vmax.f32 %v608, 0.0
  %v849 = vmax.f32 %v613, 0.0
  %v850 = vmax.f32 %v616, 0.0
  %v851 = vmax.f32 %v621, 0.0
  %v852 = vmax.f32 %v624, 0.0
  %v853 = vmax.f32 %v629, 0.0
  %v854 = vmax.f32 %v632, 0.0
  %v855 = vmax.f32 %v637, 0.0
  %v856 = vmax.f32 %v640, 0.0
  %v857 = vmax.f32 %v645, 0.0
  %v858 = vmax.f32 %v648, 0.0
  %v859 = vmax.f32 %v653, 0.0
  %v860 = vmax.f32 %v656, 0.0
  %v861 = vmax.f32 %v661, 0.0
  %v862 = vmax.f32 %v664, 0.0
  %v863 = vmax.f32 %v669, 0.0
  %v864 = vmax.f32 %v672, 0.0
  %v865 = vmax.f32 %v677, 0.0
  %v866 = vmax.f32 %v680, 0.0
  %v867 = vmax.f32 %v685, 0.0
  %v868 = vmax.f32 %v688, 0.0
  %v869 = vmax.f32 %v693, 0.0
  %v870 = vmax.f32 %v696, 0.0
  %v871 = vmax.f32 %v701, 0.0
  %v872 = vmax.f32 %v704, 0.0
  %v873 = vmax.f32 %v709, 0.0
  %v874 = vmax.f32 %v712, 0.0
  %v875 = vmax.f32 %v717, 0.0
  %v876 = vmax.f32 %v720, 0.0
  %v877 = vmax.f32 %v725, 0.0
  %v878 = vmax.f32 %v728, 0.0
  %v879 = vmax.f32 %v733, 0.0
  %v880 = vmax.f32 %v736, 0.0
  %v881 = vmax.f32 %v741, 0.0
  %v882 = vmax.f32 %v744, 0.0
  %v883 = vmax.f32 %v749, 0.0
  %v884 = vmax.f32 %v752, 0.0
  %v885 = vmax.f32 %v757, 0.0
  %v886 = vmax.f32 %v760, 0.0
  %v887 = vmax.f32 %v765, 0.0
  %v888 = vmax.f32 %v768, 0.0
  %v889 = vmax.f32 %v773, 0.0
  %v890 = vmax.f32 %v776, 0.0
  %v891 = vmax.f32 %v781, 0.0
  %v892 = vmax.f32 %v784, 0.0
  %v893 = vmax.f32 %v789, 0.0
  %v894 = vmax.f32 %v792, 0.0
  %v895 = vmax.f32 %v797, 0.0
  %v896 = vmax.f32 %v800, 0.0
  %v897 = vmax.f32 %v805, 0.0
  %v898 = vmax.f32 %v808, 0.0
  %v899 = vmax.f32 %v813, 0.0
  %v900 = vmax.f32 %v816, 0.0
  %v901 = vmax.f32 %v821, 0.0
  %v902 = vmax.f32 %v824, 0.0
  %v903 = vmax.f32 %v829, 0.0
  %v904 = vmax.f32 %v832, 0.0
  %v905 = vmax.f32 %v837, 0.0
  %v906 = vmax.f32 %v840, 0.0
  %vm907 = vcmask 523264
  %908 = vst.msk [vmem:[%s3] sm:$0xff] %vm907, %v843
  %909 = vst.msk [vmem:[%s3 + $0x8] sm:$0xff] %vm907, %v844
  %910 = vst.msk [vmem:[%s3 + $0x10] sm:$0xff] %vm907, %v845
  %911 = vst.msk [vmem:[%s3 + $0x18] sm:$0xff] %vm907, %v846
  %912 = vst.msk [vmem:[%s3 + $0x20] sm:$0xff] %vm907, %v847
  %913 = vst.msk [vmem:[%s3 + $0x28] sm:$0xff] %vm907, %v848
  %914 = vst.msk [vmem:[%s3 + $0x30] sm:$0xff] %vm907, %v849
  %915 = vst.msk [vmem:[%s3 + $0x38] sm:$0xff] %vm907, %v850
  %916 = vst.msk [vmem:[%s3 + $0x40] sm:$0xff] %vm907, %v851
  %917 = vst.msk [vmem:[%s3 + $0x48] sm:$0xff] %vm907, %v852
  %918 = vst.msk [vmem:[%s3 + $0x50] sm:$0xff] %vm907, %v853
  %919 = vst.msk [vmem:[%s3 + $0x58] sm:$0xff] %vm907, %v854
  %920 = vst.msk [vmem:[%s3 + $0x60] sm:$0xff] %vm907, %v855
  %921 = vst.msk [vmem:[%s3 + $0x68] sm:$0xff] %vm907, %v856
  %922 = vst.msk [vmem:[%s3 + $0x70] sm:$0xff] %vm907, %v857
  %923 = vst.msk [vmem:[%s3 + $0x78] sm:$0xff] %vm907, %v858
  %924 = vst.msk [vmem:[%s3 + $0x80] sm:$0xff] %vm907, %v859
  %925 = vst.msk [vmem:[%s3 + $0x88] sm:$0xff] %vm907, %v860
  %926 = vst.msk [vmem:[%s3 + $0x90] sm:$0xff] %vm907, %v861
  %927 = vst.msk [vmem:[%s3 + $0x98] sm:$0xff] %vm907, %v862
  %928 = vst.msk [vmem:[%s3 + $0xa0] sm:$0xff] %vm907, %v863
  %929 = vst.msk [vmem:[%s3 + $0xa8] sm:$0xff] %vm907, %v864
  %930 = vst.msk [vmem:[%s3 + $0xb0] sm:$0xff] %vm907, %v865
  %931 = vst.msk [vmem:[%s3 + $0xb8] sm:$0xff] %vm907, %v866
  %932 = vst.msk [vmem:[%s3 + $0xc0] sm:$0xff] %vm907, %v867
  %933 = vst.msk [vmem:[%s3 + $0xc8] sm:$0xff] %vm907, %v868
  %934 = vst.msk [vmem:[%s3 + $0xd0] sm:$0xff] %vm907, %v869
  %935 = vst.msk [vmem:[%s3 + $0xd8] sm:$0xff] %vm907, %v870
  %936 = vst.msk [vmem:[%s3 + $0xe0] sm:$0xff] %vm907, %v871
  %937 = vst.msk [vmem:[%s3 + $0xe8] sm:$0xff] %vm907, %v872
  %938 = vst.msk [vmem:[%s3 + $0xf0] sm:$0xff] %vm907, %v873
  %939 = vst.msk [vmem:[%s3 + $0xf8] sm:$0xff] %vm907, %v874
  %940 = vst.msk [vmem:[%s3 + $0x100] sm:$0xff] %vm907, %v875
  %941 = vst.msk [vmem:[%s3 + $0x108] sm:$0xff] %vm907, %v876
  %942 = vst.msk [vmem:[%s3 + $0x110] sm:$0xff] %vm907, %v877
  %943 = vst.msk [vmem:[%s3 + $0x118] sm:$0xff] %vm907, %v878
  %944 = vst.msk [vmem:[%s3 + $0x120] sm:$0xff] %vm907, %v879
  %945 = vst.msk [vmem:[%s3 + $0x128] sm:$0xff] %vm907, %v880
  %946 = vst.msk [vmem:[%s3 + $0x130] sm:$0xff] %vm907, %v881
  %947 = vst.msk [vmem:[%s3 + $0x138] sm:$0xff] %vm907, %v882
  %948 = vst.msk [vmem:[%s3 + $0x140] sm:$0xff] %vm907, %v883
  %949 = vst.msk [vmem:[%s3 + $0x148] sm:$0xff] %vm907, %v884
  %950 = vst.msk [vmem:[%s3 + $0x150] sm:$0xff] %vm907, %v885
  %951 = vst.msk [vmem:[%s3 + $0x158] sm:$0xff] %vm907, %v886
  %952 = vst.msk [vmem:[%s3 + $0x160] sm:$0xff] %vm907, %v887
  %953 = vst.msk [vmem:[%s3 + $0x168] sm:$0xff] %vm907, %v888
  %954 = vst.msk [vmem:[%s3 + $0x170] sm:$0xff] %vm907, %v889
  %955 = vst.msk [vmem:[%s3 + $0x178] sm:$0xff] %vm907, %v890
  %956 = vst.msk [vmem:[%s3 + $0x180] sm:$0xff] %vm907, %v891
  %957 = vst.msk [vmem:[%s3 + $0x188] sm:$0xff] %vm907, %v892
  %958 = vst.msk [vmem:[%s3 + $0x190] sm:$0xff] %vm907, %v893
  %959 = vst.msk [vmem:[%s3 + $0x198] sm:$0xff] %vm907, %v894
  %960 = vst.msk [vmem:[%s3 + $0x1a0] sm:$0xff] %vm907, %v895
  %961 = vst.msk [vmem:[%s3 + $0x1a8] sm:$0xff] %vm907, %v896
  %962 = vst.msk [vmem:[%s3 + $0x1b0] sm:$0xff] %vm907, %v897
  %963 = vst.msk [vmem:[%s3 + $0x1b8] sm:$0xff] %vm907, %v898
  %964 = vst.msk [vmem:[%s3 + $0x1c0] sm:$0xff] %vm907, %v899
  %965 = vst.msk [vmem:[%s3 + $0x1c8] sm:$0xff] %vm907, %v900
  %966 = vst.msk [vmem:[%s3 + $0x1d0] sm:$0xff] %vm907, %v901
  %967 = vst.msk [vmem:[%s3 + $0x1d8] sm:$0xff] %vm907, %v902
  %968 = vst.msk [vmem:[%s3 + $0x1e0] sm:$0xff] %vm907, %v903
  %969 = vst.msk [vmem:[%s3 + $0x1e8] sm:$0xff] %vm907, %v904
  %970 = vst.msk [vmem:[%s3 + $0x1f0] sm:$0xff] %vm907, %v905
  %971 = vst.msk [vmem:[%s3 + $0x1f8] sm:$0xff] %vm907, %v906
  // Predicated region
  $region14: #{new_model_forward.2} parent=0 // pred_check
    _
  $region15: #{new_model_forward.2} parent=0 // pred_check_branch
    %973 = sbr.rel (0) target = $region17
  $region16: #{new_model_forward.2} parent=0 // pred_region
    _
  $region17: #{new_model_forward.2} parent=0 // pred_fallthru
    _
  // Predicated region
  $region18: #{new_model_forward.2} parent=0 // pred_check
    _
  $region19: #{new_model_forward.2} parent=0 // pred_check_branch
    %975 = sbr.rel (0) target = $region21
  $region20: #{new_model_forward.2} parent=0 // pred_region
    _
  $region21: #{new_model_forward.2} parent=0 // pred_fallthru
    _

// kernel: new_model_forward.3
$region0: #{new_model_forward.3}
  #allocation0 [shape = 'u32[]', space=smem, size = 0x4, offset = 0x4, fixed_abs, tag = 'smem constant byte address 0x4 - core index']
  #allocation1 [shape = 'u32[144,128]{1,0:T(1,128)}', space=vmem, size = 0x12000, scoped, tag = 'internal scratch']
  %s0 = inlined_call_operand.vmem [shape: f32[8,9,9,64], index: 0, kind: input, shape index: {}]
  %s1 = inlined_call_operand.hbm [shape: f32[2,8,8,64], index: 1, kind: output, shape index: {}]
  %s2 = sld [smem:[#allocation0]]
  $region37: #{new_model_forward.3} parent=0
    _
  %s4 = ssub.s32 1, %s2
  %s5 = scalar_select 0, %s4, %s2
  $region1: #{new_model_forward.3} parent=0
    #allocation2 [shape = 'u8[65536]{0}', space=vmem, size = 0x10000, scoped, tag = 'output window, operand 0']
    #allocation3 [shape = 's32[2]{0}', space=sflag, size = 0x8, scoped, tag = 'scoped memory for new_model_forward.3']
    %6 = vsyncpa [#allocation3], 0
    %s7 = scalar_lea.sflag [#allocation3], 1
    %8 = vsyncpa %s7, 0
    loop: start=0, step=1, limit=4
    $region2: #{new_model_forward.3} parent=1 // loop_pre_header
      _
    $region3: #{new_model_forward.3} parent=1 // loop_header
      %s10 = sphi 0, %s14
      %p11 = scmp.ge.s32.totalorder %s10, 4
      %s20 = sphi 0, %s22
      %s23 = sphi 0, %s20
      %s24 = sphi 0, %s23
      %s40 = sphi 0, %s24
      %s46 = sphi 0, %s48
      %s49 = sphi 0, %s46
      %s50 = sphi 0, %s49
      %s66 = sphi 0, %s50
    $region4: #{new_model_forward.3} parent=1 // loop_header_branch
      %13 = sbr.rel (%p11) target = $region8
    $region5: #{new_model_forward.3} parent=1 // loop_body
      %s15 = ssub.s32 %s10, 1
      %s16 = ssub.s32 %s10, 2
      %s17 = sadd.s32 %s10, 1
      %s18 = ssub.s32 %s10, %s17
      %p19 = scmp.eq.s32.totalorder %s18, 0
      %s21 = sadd.s32 %s20, 1
      %s22 = scalar_select %p19, %s20, %s21
      %p25 = pneg %p19
      %p26 = scmp.eq.s32.totalorder %s10, 1
      %p27 = por %p25, %p26
      %p28 = scmp.ne.s32.totalorder %s20, %s23
      %p29 = scmp.eq.s32.totalorder %s10, 0
      %p30 = por %p28, %p29
      %p31 = scmp.ne.s32.totalorder %s20, %s23
      %p32 = scmp.eq.s32.totalorder %s15, 1
      %p33 = por %p31, %p32
      %p34 = scmp.ne.s32.totalorder %s23, %s24
      %p35 = scmp.eq.s32.totalorder %s15, 0
      %p36 = por %p34, %p35
      %p37 = scmp.ne.s32.totalorder %s23, %s24
      %p38 = scmp.eq.s32.totalorder %s16, 1
      %p39 = por %p37, %p38
      %p41 = scmp.ne.s32.totalorder %s24, %s40
      %p42 = scmp.eq.s32.totalorder %s16, 0
      %p43 = por %p41, %p42
      %s44 = ssub.s32 %s10, %s17
      %p45 = scmp.eq.s32.totalorder %s44, 0
      %s47 = sadd.s32 %s46, 1
      %s48 = scalar_select %p45, %s46, %s47
      %p51 = pneg %p45
      %p52 = scmp.eq.s32.totalorder %s10, 1
      %p53 = por %p51, %p52
      %p54 = scmp.ne.s32.totalorder %s46, %s49
      %p55 = scmp.eq.s32.totalorder %s10, 0
      %p56 = por %p54, %p55
      %p57 = scmp.ne.s32.totalorder %s46, %s49
      %p58 = scmp.eq.s32.totalorder %s15, 1
      %p59 = por %p57, %p58
      %p60 = scmp.ne.s32.totalorder %s49, %s50
      %p61 = scmp.eq.s32.totalorder %s15, 0
      %p62 = por %p60, %p61
      %p63 = scmp.ne.s32.totalorder %s49, %s50
      %p64 = scmp.eq.s32.totalorder %s16, 1
      %p65 = por %p63, %p64
      %p67 = scmp.ne.s32.totalorder %s50, %s66
      %p68 = scmp.eq.s32.totalorder %s16, 0
      %p69 = por %p67, %p68
      %p70 = scmp.le.s32.totalorder 1, %s10
      %p71 = scmp.lt.s32.totalorder %s10, 3
      %p72 = pnand %p70, %p71
      %p73 = pneg %p72
      // Predicated region
      $region9: #{new_model_forward.3} parent=5 // pred_check
        _
      $region10: #{new_model_forward.3} parent=5 // pred_check_branch
        %75 = sbr.rel (%p72) target = $region12
      $region11: #{new_model_forward.3} parent=5 // pred_region
        %s76 = ssub.s32 %s10, 1
      $region12: #{new_model_forward.3} parent=5 // pred_fallthru
        _
      %p77 = scmp.lt.s32.totalorder %s10, 2
      // Predicated region
      $region13: #{new_model_forward.3} parent=5 // pred_check
        %p78 = pneg %p77
      $region14: #{new_model_forward.3} parent=5 // pred_check_branch
        %80 = sbr.rel (%p78) target = $region16
      $region15: #{new_model_forward.3} parent=5 // pred_region
        // Predicated region
        $region17: #{new_model_forward.3} parent=15 // pred_check
          %p81 = pneg %p30
        $region18: #{new_model_forward.3} parent=15 // pred_check_branch
          %83 = sbr.rel (%p81) target = $region20
        $region19: #{new_model_forward.3} parent=15 // pred_region
          %s84 = smul.u32 4, %s10
          %p85 = scmp.lt.s32.totalorder %s84, 7
          %s86 = scalar_select %p85, %s84, 7
          %s87 = smul.addr %s86, 18
          %s88 = smul.addr %s87, 8
          %s89 = scalar_lea.vmem %s0, %s88
          %s90 = smul.u32 4, %s10
        $region20: #{new_model_forward.3} parent=15 // pred_fallthru
          _
      $region16: #{new_model_forward.3} parent=5 // pred_fallthru
        _
      %p91 = scmp.le.s32.totalorder 1, %s10
      %p92 = scmp.lt.s32.totalorder %s10, 3
      %p93 = pnand %p91, %p92
      %p94 = pneg %p93
      // Predicated region
      $region21: #{new_model_forward.3} parent=5 // pred_check
        _
      $region22: #{new_model_forward.3} parent=5 // pred_check_branch
        %96 = sbr.rel (%p93) target = $region24
      $region23: #{new_model_forward.3} parent=5 // pred_region
        %s97 = ssub.s32 %s10, 1
        %s98 = smul.u32 4, %s15
        %p99 = scmp.lt.s32.totalorder %s98, 7
        %s100 = scalar_select %p99, %s98, 7
        %s101 = smul.addr %s100, 18
        %s102 = smul.addr %s101, 8
        %s103 = scalar_lea.vmem %s0, %s102
        %p104 = pneg %p36
        %p105 = pneg %p33
        %p106 = pneg %p62
        %p107 = pneg %p59
        %s108 = sand.u32 %s49, 1
        %s109 = scalar_lea.sflag [#allocation3], %s108
        %s110 = sand.u32 %s49, 1
        %s111 = smul.addr %s110, 64
        %s112 = scalar_lea.vmem [#allocation2], %s111
        %s113 = smul.u32 4, %s15
        %p114 = scmp.lt.s32.totalorder %s113, 7
        %s115 = scalar_select %p114, %s113, 7
        %s116 = smul.addr %s115, 18
        %s117 = smul.addr %s116, 8
        %s118 = scalar_lea.vmem %s0, %s117
        %s119 = smul.u32 4, %s15
        %v120 = vld [vmem:[%s118 + $0x10] sm:$0xff]
        %v121 = vld [vmem:[%s118 + $0x18] sm:$0x1]
        %v122 = vld [vmem:[%s118 + $0x20] sm:$0xff]
        %v123 = vld [vmem:[%s118 + $0x28] sm:$0x1]
        %v124 = vld [vmem:[%s118 + $0x30] sm:$0xff]
        %v125 = vld [vmem:[%s118 + $0x38] sm:$0x1]
        %v126 = vld [vmem:[%s118 + $0x40] sm:$0xff]
        %v127 = vld [vmem:[%s118 + $0x48] sm:$0x1]
        %v128 = vld [vmem:[%s118 + $0x50] sm:$0xff]
        %v129 = vld [vmem:[%s118 + $0x58] sm:$0x1]
        %v130 = vld [vmem:[%s118 + $0x60] sm:$0xff]
        %v131 = vld [vmem:[%s118 + $0x68] sm:$0x1]
        %v132 = vld [vmem:[%s118 + $0x70] sm:$0xff]
        %v133 = vld [vmem:[%s118 + $0x78] sm:$0x1]
        %v134 = vld [vmem:[%s118 + $0x80] sm:$0xff]
        %v135 = vld [vmem:[%s118 + $0x88] sm:$0x1]
        %s136 = scalar_lea.vmem %s118, 144
        %v137 = vld [vmem:[%s136 + $0x10] sm:$0xff]
        %v138 = vld [vmem:[%s136 + $0x18] sm:$0x1]
        %v139 = vld [vmem:[%s136 + $0x20] sm:$0xff]
        %v140 = vld [vmem:[%s136 + $0x28] sm:$0x1]
        %v141 = vld [vmem:[%s136 + $0x30] sm:$0xff]
        %v142 = vld [vmem:[%s136 + $0x38] sm:$0x1]
        %v143 = vld [vmem:[%s136 + $0x40] sm:$0xff]
        %v144 = vld [vmem:[%s136 + $0x48] sm:$0x1]
        %v145 = vld [vmem:[%s136 + $0x50] sm:$0xff]
        %v146 = vld [vmem:[%s136 + $0x58] sm:$0x1]
        %v147 = vld [vmem:[%s136 + $0x60] sm:$0xff]
        %v148 = vld [vmem:[%s136 + $0x68] sm:$0x1]
        %v149 = vld [vmem:[%s136 + $0x70] sm:$0xff]
        %v150 = vld [vmem:[%s136 + $0x78] sm:$0x1]
        %v151 = vld [vmem:[%s136 + $0x80] sm:$0xff]
        %v152 = vld [vmem:[%s136 + $0x88] sm:$0x1]
        %s153 = scalar_lea.vmem %s118, 288
        %v154 = vld [vmem:[%s153] sm:$0xff]
        %v155 = vld [vmem:[%s153 + $0x8] sm:$0x1]
        %v156 = vld [vmem:[%s153 + $0x10] sm:$0xff]
        %v157 = vld [vmem:[%s153 + $0x18] sm:$0x1]
        %v158 = vld [vmem:[%s153 + $0x20] sm:$0xff]
        %v159 = vld [vmem:[%s153 + $0x28] sm:$0x1]
        %v160 = vld [vmem:[%s153 + $0x30] sm:$0xff]
        %v161 = vld [vmem:[%s153 + $0x38] sm:$0x1]
        %v162 = vld [vmem:[%s153 + $0x40] sm:$0xff]
        %v163 = vld [vmem:[%s153 + $0x48] sm:$0x1]
        %v164 = vld [vmem:[%s153 + $0x50] sm:$0xff]
        %v165 = vld [vmem:[%s153 + $0x58] sm:$0x1]
        %v166 = vld [vmem:[%s153 + $0x60] sm:$0xff]
        %v167 = vld [vmem:[%s153 + $0x68] sm:$0x1]
        %v168 = vld [vmem:[%s153 + $0x70] sm:$0xff]
        %v169 = vld [vmem:[%s153 + $0x78] sm:$0x1]
        %v170 = vld [vmem:[%s153 + $0x80] sm:$0xff]
        %v171 = vld [vmem:[%s153 + $0x88] sm:$0x1]
        %s172 = scalar_lea.vmem %s118, 432
        %v173 = vld [vmem:[%s172] sm:$0xff]
        %v174 = vld [vmem:[%s172 + $0x8] sm:$0x1]
        %v175 = vld [vmem:[%s172 + $0x10] sm:$0xff]
        %v176 = vld [vmem:[%s172 + $0x18] sm:$0x1]
        %v177 = vld [vmem:[%s172 + $0x20] sm:$0xff]
        %v178 = vld [vmem:[%s172 + $0x28] sm:$0x1]
        %v179 = vld [vmem:[%s172 + $0x30] sm:$0xff]
        %v180 = vld [vmem:[%s172 + $0x38] sm:$0x1]
        %v181 = vld [vmem:[%s172 + $0x40] sm:$0xff]
        %v182 = vld [vmem:[%s172 + $0x48] sm:$0x1]
        %v183 = vld [vmem:[%s172 + $0x50] sm:$0xff]
        %v184 = vld [vmem:[%s172 + $0x58] sm:$0x1]
        %v185 = vld [vmem:[%s172 + $0x60] sm:$0xff]
        %v186 = vld [vmem:[%s172 + $0x68] sm:$0x1]
        %v187 = vld [vmem:[%s172 + $0x70] sm:$0xff]
        %v188 = vld [vmem:[%s172 + $0x78] sm:$0x1]
        %v189 = vld [vmem:[%s172 + $0x80] sm:$0xff]
        %v190 = vld [vmem:[%s172 + $0x88] sm:$0x1]
        %vm207 = vcmask 1046528
        %v208 = vrot.slane %v137, 1
        %v209 = vrot.slane %v138, 1
        %v210 = vsel %vm207, %v208, %v209
        %v211 = vrot.slane %v139, 1
        %v212 = vrot.slane %v140, 1
        %v213 = vsel %vm207, %v211, %v212
        %v214 = vrot.slane %v141, 1
        %v215 = vrot.slane %v142, 1
        %v216 = vsel %vm207, %v214, %v215
        %v217 = vrot.slane %v143, 1
        %v218 = vrot.slane %v144, 1
        %v219 = vsel %vm207, %v217, %v218
        %v220 = vrot.slane %v145, 1
        %v221 = vrot.slane %v146, 1
        %v222 = vsel %vm207, %v220, %v221
        %v223 = vrot.slane %v147, 1
        %v224 = vrot.slane %v148, 1
        %v225 = vsel %vm207, %v223, %v224
        %v226 = vrot.slane %v149, 1
        %v227 = vrot.slane %v150, 1
        %v228 = vsel %vm207, %v226, %v227
        %v229 = vrot.slane %v151, 1
        %v230 = vrot.slane %v152, 1
        %v231 = vsel %vm207, %v229, %v230
        %v240 = vmax.f32 %v137, %v210
        %v241 = vmax.f32 %v139, %v213
        %v242 = vmax.f32 %v141, %v216
        %v243 = vmax.f32 %v143, %v219
        %v244 = vmax.f32 %v145, %v222
        %v245 = vmax.f32 %v147, %v225
        %v246 = vmax.f32 %v149, %v228
        %v247 = vmax.f32 %v151, %v231
        %v266 = vrot.slane %v173, 1
        %v267 = vrot.slane %v174, 1
        %v268 = vsel %vm207, %v266, %v267
        %v269 = vrot.slane %v175, 1
        %v270 = vrot.slane %v176, 1
        %v271 = vsel %vm207, %v269, %v270
        %v272 = vrot.slane %v177, 1
        %v273 = vrot.slane %v178, 1
        %v274 = vsel %vm207, %v272, %v273
        %v275 = vrot.slane %v179, 1
        %v276 = vrot.slane %v180, 1
        %v277 = vsel %vm207, %v275, %v276
        %v278 = vrot.slane %v181, 1
        %v279 = vrot.slane %v182, 1
        %v280 = vsel %vm207, %v278, %v279
        %v281 = vrot.slane %v183, 1
        %v282 = vrot.slane %v184, 1
        %v283 = vsel %vm207, %v281, %v282
        %v284 = vrot.slane %v185, 1
        %v285 = vrot.slane %v186, 1
        %v286 = vsel %vm207, %v284, %v285
        %v287 = vrot.slane %v187, 1
        %v288 = vrot.slane %v188, 1
        %v289 = vsel %vm207, %v287, %v288
        %v290 = vrot.slane %v189, 1
        %v291 = vrot.slane %v190, 1
        %v292 = vsel %vm207, %v290, %v291
        %v302 = vmax.f32 %v173, %v268
        %v303 = vmax.f32 %v175, %v271
        %v304 = vmax.f32 %v177, %v274
        %v305 = vmax.f32 %v179, %v277
        %v306 = vmax.f32 %v181, %v280
        %v307 = vmax.f32 %v183, %v283
        %v308 = vmax.f32 %v185, %v286
        %v309 = vmax.f32 %v187, %v289
        %v310 = vmax.f32 %v189, %v292
        %v319 = vrot.slane %v240, 7
        %v320 = vrot.slane %v241, 7
        %v321 = vrot.slane %v242, 7
        %v322 = vrot.slane %v243, 7
        %v323 = vrot.slane %v244, 7
        %v324 = vrot.slane %v245, 7
        %v325 = vrot.slane %v246, 7
        %v326 = vrot.slane %v247, 7
        %v335 = vmax.f32 %v120, %v319
        %v336 = vmax.f32 %v121, %v319
        %v337 = vmax.f32 %v122, %v320
        %v338 = vmax.f32 %v123, %v320
        %v339 = vmax.f32 %v124, %v321
        %v340 = vmax.f32 %v125, %v321
        %v341 = vmax.f32 %v126, %v322
        %v342 = vmax.f32 %v127, %v322
        %v343 = vmax.f32 %v128, %v323
        %v344 = vmax.f32 %v129, %v323
        %v345 = vmax.f32 %v130, %v324
        %v346 = vmax.f32 %v131, %v324
        %v347 = vmax.f32 %v132, %v325
        %v348 = vmax.f32 %v133, %v325
        %v349 = vmax.f32 %v134, %v326
        %v350 = vmax.f32 %v135, %v326
        %v360 = vrot.slane %v302, 7
        %v361 = vrot.slane %v303, 7
        %v362 = vrot.slane %v304, 7
        %v363 = vrot.slane %v305, 7
        %v364 = vrot.slane %v306, 7
        %v365 = vrot.slane %v307, 7
        %v366 = vrot.slane %v308, 7
        %v367 = vrot.slane %v309, 7
        %v368 = vrot.slane %v310, 7
        %v378 = vmax.f32 %v154, %v360
        %v379 = vmax.f32 %v155, %v360
        %v380 = vmax.f32 %v156, %v361
        %v381 = vmax.f32 %v157, %v361
        %v382 = vmax.f32 %v158, %v362
        %v383 = vmax.f32 %v159, %v362
        %v384 = vmax.f32 %v160, %v363
        %v385 = vmax.f32 %v161, %v363
        %v386 = vmax.f32 %v162, %v364
        %v387 = vmax.f32 %v163, %v364
        %v388 = vmax.f32 %v164, %v365
        %v389 = vmax.f32 %v165, %v365
        %v390 = vmax.f32 %v166, %v366
        %v391 = vmax.f32 %v167, %v366
        %v392 = vmax.f32 %v168, %v367
        %v393 = vmax.f32 %v169, %v367
        %v394 = vmax.f32 %v170, %v368
        %v395 = vmax.f32 %v171, %v368
        %v396 = vmax.f32 %v378, %v380
        %v397 = vmax.f32 %v379, %v381
        %v398 = vmax.f32 %v380, %v382
        %v399 = vmax.f32 %v381, %v383
        %v400 = vmax.f32 %v382, %v384
        %v401 = vmax.f32 %v383, %v385
        %v402 = vmax.f32 %v384, %v386
        %v403 = vmax.f32 %v385, %v387
        %v404 = vmax.f32 %v386, %v388
        %v405 = vmax.f32 %v387, %v389
        %v406 = vmax.f32 %v388, %v390
        %v407 = vmax.f32 %v389, %v391
        %v408 = vmax.f32 %v390, %v392
        %v409 = vmax.f32 %v391, %v393
        %v410 = vmax.f32 %v392, %v394
        %v411 = vmax.f32 %v393, %v395
        %v412 = vmax.f32 %v335, %v396
        %v413 = vmax.f32 %v336, %v397
        %v414 = vmax.f32 %v337, %v398
        %v415 = vmax.f32 %v338, %v399
        %v416 = vmax.f32 %v339, %v400
        %v417 = vmax.f32 %v340, %v401
        %v418 = vmax.f32 %v341, %v402
        %v419 = vmax.f32 %v342, %v403
        %v420 = vmax.f32 %v343, %v404
        %v421 = vmax.f32 %v344, %v405
        %v422 = vmax.f32 %v345, %v406
        %v423 = vmax.f32 %v346, %v407
        %v424 = vmax.f32 %v347, %v408
        %v425 = vmax.f32 %v348, %v409
        %v426 = vmax.f32 %v349, %v410
        %v427 = vmax.f32 %v350, %v411
        %vm428 = vcmask 523265
        %429 = vst.msk [vmem:[%s112 - $0x1] sm:$0xfe] %vm428, %v412
        %vm430 = vcmask 516096
        %431 = vst.msk [vmem:[%s112 + $0x7] sm:$0x1] %vm430, %v413
        %432 = vst.msk [vmem:[%s112 + $0x7] sm:$0xfe] %vm428, %v414
        %433 = vst.msk [vmem:[%s112 + $0xf] sm:$0x1] %vm430, %v415
        %434 = vst.msk [vmem:[%s112 + $0xf] sm:$0xfe] %vm428, %v416
        %435 = vst.msk [vmem:[%s112 + $0x17] sm:$0x1] %vm430, %v417
        %436 = vst.msk [vmem:[%s112 + $0x17] sm:$0xfe] %vm428, %v418
        %437 = vst.msk [vmem:[%s112 + $0x1f] sm:$0x1] %vm430, %v419
        %438 = vst.msk [vmem:[%s112 + $0x1f] sm:$0xfe] %vm428, %v420
        %439 = vst.msk [vmem:[%s112 + $0x27] sm:$0x1] %vm430, %v421
        %440 = vst.msk [vmem:[%s112 + $0x27] sm:$0xfe] %vm428, %v422
        %441 = vst.msk [vmem:[%s112 + $0x2f] sm:$0x1] %vm430, %v423
        %442 = vst.msk [vmem:[%s112 + $0x2f] sm:$0xfe] %vm428, %v424
        %443 = vst.msk [vmem:[%s112 + $0x37] sm:$0x1] %vm430, %v425
        %444 = vst.msk [vmem:[%s112 + $0x37] sm:$0xfe] %vm428, %v426
        %445 = vst.msk [vmem:[%s112 + $0x3f] sm:$0x1] %vm430, %v427
        %s446 = sand.u32 %s49, 1
        %s447 = scalar_lea.sflag [#allocation3], %s446
        %s448 = sand.u32 %s49, 1
        %s449 = smul.addr %s448, 64
        %s450 = scalar_lea.vmem [#allocation2], %s449
        // Predicated region
        $region25: #{new_model_forward.3} parent=23 // pred_check
          %p451 = pneg %p59
        $region26: #{new_model_forward.3} parent=23 // pred_check_branch
          %453 = sbr.rel (%p451) target = $region28
        $region27: #{new_model_forward.3} parent=23 // pred_region
          %s455 = ssub.s32 1024, 1024
          %456 = vsyncadd %s447, %s455
          %s457 = smul.addr %s15, 8
          %s458 = smul.addr %s457, 128
          %s459 = scalar_lea.hbm %s1, %s458
          %s460 = sshll.u32 %s450, 4
          %s461 = int_to_ptr.vmem [resolvable:$true] %s460
          %466 = dma.vmem_to_hbm [thread:$0]  %s461, 1024, %s459, %s447, 128, 128, 8
        $region28: #{new_model_forward.3} parent=23 // pred_fallthru
          _
      $region24: #{new_model_forward.3} parent=5 // pred_fallthru
        _
      %p467 = scmp.le.s32.totalorder 2, %s10
      // Predicated region
      $region29: #{new_model_forward.3} parent=5 // pred_check
        %p468 = pneg %p467
      $region30: #{new_model_forward.3} parent=5 // pred_check_branch
        %470 = sbr.rel (%p468) target = $region32
      $region31: #{new_model_forward.3} parent=5 // pred_region
        %s471 = ssub.s32 %s10, 2
        // Predicated region
        $region33: #{new_model_forward.3} parent=31 // pred_check
          %p472 = pneg %p65
        $region34: #{new_model_forward.3} parent=31 // pred_check_branch
          %474 = sbr.rel (%p472) target = $region36
        $region35: #{new_model_forward.3} parent=31 // pred_region
          %s475 = sand.u32 %s50, 1
          %s476 = scalar_lea.sflag [#allocation3], %s475
          %s477 = sand.u32 %s50, 1
          %s478 = smul.addr %s477, 64
          %s479 = scalar_lea.vmem [#allocation2], %s478
          %480 = dma.done %s476, 1024
        $region36: #{new_model_forward.3} parent=31 // pred_fallthru
          _
      $region32: #{new_model_forward.3} parent=5 // pred_fallthru
        _
    $region6: #{new_model_forward.3} parent=1 // loop_footer
      %s14 = sadd.s32 1, %s10
    $region7: #{new_model_forward.3} parent=1 // loop_footer_branch
      %9 = sbr.rel target = $region3
    $region8: #{new_model_forward.3} parent=1 // loop_exit
      _
    %481 = vsyncpa [#allocation3], 1
    %s482 = scalar_lea.sflag [#allocation3], 1
    %483 = vsyncpa %s482, 1

</llo_original>
